<compile_context>
chip_gen: v5e
topology: v5e:2x2
jax: 0.10.0
libtpu: 0.0.40
codegen_flags: <defaults>
</compile_context>

<pallas_src>
import functools

import jax
import jax.numpy as jnp
from jax import lax
from jax.experimental import pallas as pl
from jax.experimental.pallas import tpu as pltpu


def _round_up(a, b):
    return (a + b - 1) // b * b


def _amsoftmax_kernel(margin, scale, n_classes, tc, mm_dtype, needs_class_mask,
                      x_ref, w_ref, invwn_ref, label_ref,
                      costh_ref, persample_ref,
                      xmm, m_run, l_run, t_run):
    j = pl.program_id(1)
    nj = pl.num_programs(1)

    # Per-batch-tile init: normalize x rows once (rsqrt on the EUP), cast to
    # the MXU dtype once, and reset the online-logsumexp state.
    @pl.when(j == 0)
    def _init():
        x = x_ref[...]                                           # (TB, D) f32
        xsq = jnp.sum(x * x, axis=1, keepdims=True)
        inv_xn = lax.rsqrt(jnp.maximum(xsq, 1e-24))              # == 1/clamp(||x||,1e-12)
        xmm[...] = (x * inv_xn).astype(mm_dtype)                 # (TB, D) mm_dtype
        m_run[...] = jnp.full(m_run.shape, -jnp.inf, jnp.float32)
        l_run[...] = jnp.zeros(l_run.shape, jnp.float32)
        t_run[...] = jnp.zeros(t_run.shape, jnp.float32)

    # MXU matmul of the pre-normalized x tile against the raw W tile
    # (low-precision operands, f32 accumulate), then one broadcast multiply by
    # the hoisted column inverse norms — no normalized W copy anywhere.
    s = jnp.dot(xmm[...], w_ref[...], preferred_element_type=jnp.float32)
    costh = s * invwn_ref[...]                                   # (TB, TC) f32
    costh_ref[...] = costh

    labels = label_ref[...]                                      # (TB, 1) int32
    col = j * tc + lax.broadcasted_iota(jnp.int32, costh.shape, 1)
    is_target = col == labels
    # scale folded into the margin subtraction (scale*margin is a constant).
    logits = scale * costh - jnp.where(is_target, scale * margin, 0.0)
    if needs_class_mask:
        # Mask padded class columns out of the softmax (only compiled in when
        # C actually needed padding).
        logits = jnp.where(col < n_classes, logits, -1e30)

    # Online logsumexp + target-logit accumulation across class tiles.
    m_prev = m_run[...]
    m_new = jnp.maximum(m_prev, jnp.max(logits, axis=1, keepdims=True))
    alpha = jnp.exp(m_prev - m_new)
    l_run[...] = alpha * l_run[...] + jnp.sum(jnp.exp(logits - m_new),
                                              axis=1, keepdims=True)
    t_run[...] = t_run[...] + jnp.sum(jnp.where(is_target, logits, 0.0),
                                      axis=1, keepdims=True)
    m_run[...] = m_new

    @pl.when(j == nj - 1)
    def _final():
        # per-sample CE: logsumexp(logits) - logits[label]
        persample_ref[...] = m_run[...] + jnp.log(l_run[...]) - t_run[...]


def amsoftmax_loss(x, W, labels, margin=0.3, scale=15.0, *,
                   tb=None, tc=None, mm_dtype=jnp.bfloat16):
    """Returns (loss, costh) matching the PyTorch module's forward."""
    B, D = x.shape
    D2, C = W.shape
    assert D == D2 and labels.shape[0] == B

    x = x.astype(jnp.float32)
    W = W.astype(jnp.float32)

    # Tile sizes: batch tile multiple of 8 (sublanes), class tile multiple of
    # 128 (lanes, lane-dense stores).  Defaults sized for production shapes.
    if tb is None:
        tb = min(128, _round_up(B, 8))
    tb = max(8, _round_up(tb, 8))
    if tc is None:
        tc = min(512, _round_up(C, 128))
    tc = max(128, _round_up(tc, 128))

    B_pad = _round_up(B, tb)
    C_pad = _round_up(C, tc)

    # Hoisted: per-column inverse L2 norm of W, exact f32, torch clamp(1e-12).
    w_sumsq = jnp.sum(W * W, axis=0, keepdims=True)              # (1, C)
    inv_wn = lax.rsqrt(jnp.maximum(w_sumsq, 1e-24))              # (1, C)

    labels_p = labels.astype(jnp.int32)
    if B_pad != B:
        x = jnp.pad(x, ((0, B_pad - B), (0, 0)))
        labels_p = jnp.pad(labels_p, (0, B_pad - B))
    if C_pad != C:
        W = jnp.pad(W, ((0, 0), (0, C_pad - C)))
        inv_wn = jnp.pad(inv_wn, ((0, 0), (0, C_pad - C)))
    labels2d = labels_p.reshape(B_pad, 1)
    W_mm = W.astype(mm_dtype)          # stream W from HBM in the MXU dtype

    grid = (B_pad // tb, C_pad // tc)

    # VMEM budget: double-buffered tiles + scratch, with headroom; keep the
    # explicit limit conservative so it fits v7x's 64 MiB physical VMEM.
    w_itemsize = jnp.dtype(mm_dtype).itemsize
    tile_bytes = (tb * D * 4             # x tile (f32)
                  + tb * D * w_itemsize  # normalized-x scratch (mm_dtype)
                  + D * tc * w_itemsize  # W tile
                  + 8 * tc * 4           # inv col-norm tile (sublane padded)
                  + tb * 128 * 4         # label tile (lane padded)
                  + tb * tc * 4          # costh tile
                  + tb * 128 * 4)        # per-sample tile (lane padded)
    vmem_limit = int(min(max(3 * tile_bytes + (8 << 20), 24 << 20), 48 << 20))

    kernel = functools.partial(_amsoftmax_kernel, float(margin), float(scale),
                               int(C), int(tc), mm_dtype, bool(C_pad != C))

    costh_p, per_sample = pl.pallas_call(
        kernel,
        out_shape=(
            jax.ShapeDtypeStruct((B_pad, C_pad), jnp.float32),
            jax.ShapeDtypeStruct((B_pad, 1), jnp.float32),
        ),
        grid=grid,
        in_specs=[
            pl.BlockSpec((tb, D), lambda i, j: (i, 0)),    # x (f32)
            pl.BlockSpec((D, tc), lambda i, j: (0, j)),    # W (mm_dtype)
            pl.BlockSpec((1, tc), lambda i, j: (0, j)),    # 1/||W_col||
            pl.BlockSpec((tb, 1), lambda i, j: (i, 0)),    # labels
        ],
        out_specs=(
            pl.BlockSpec((tb, tc), lambda i, j: (i, j)),   # costh (lane-dense)
            pl.BlockSpec((tb, 1), lambda i, j: (i, 0)),    # per-sample CE
        ),
        scratch_shapes=[
            pltpu.VMEM((tb, D), mm_dtype),      # normalized x, MXU dtype
            pltpu.VMEM((tb, 1), jnp.float32),   # running max
            pltpu.VMEM((tb, 1), jnp.float32),   # running exp-sum
            pltpu.VMEM((tb, 1), jnp.float32),   # running target logit
        ],
        compiler_params=pltpu.CompilerParams(
            dimension_semantics=("parallel", "arbitrary"),
            vmem_limit_bytes=vmem_limit,
        ),
    )(x, W_mm, inv_wn, labels2d)

    loss = jnp.mean(per_sample[:B, 0])    # nn.CrossEntropyLoss: mean reduction
    costh = costh_p[:B, :C]
    return loss, costh


def _reference(x, W, labels, margin=0.3, scale=15.0):
    xn = x / jnp.maximum(jnp.linalg.norm(x, axis=1, keepdims=True), 1e-12)
    wn = W / jnp.maximum(jnp.linalg.norm(W, axis=0, keepdims=True), 1e-12)
    costh = xn @ wn
    delt = jax.nn.one_hot(labels, W.shape[1], dtype=costh.dtype) * margin
    logits = scale * (costh - delt)
    logp = jax.nn.log_softmax(logits, axis=1)
    loss = -jnp.mean(jnp.take_along_axis(logp, labels[:, None], axis=1))
    return loss, costh


if __name__ == "__main__":
    margin, scale = 0.3, 15.0

    def make_inputs(key, B, nOut, nClasses):
        kx, kw, kl = jax.random.split(key, 3)
        x = jax.random.normal(kx, (B, nOut), dtype=jnp.float32)
        std = (2.0 / (nOut + nClasses)) ** 0.5     # xavier_normal_, gain=1
        W = std * jax.random.normal(kw, (nOut, nClasses), dtype=jnp.float32)
        labels = jax.random.randint(kl, (B,), 0, nClasses, dtype=jnp.int32)
        return x, W, labels

    # Case 1: aligned shapes, 2x2 grid, f32 MXU path — tight check.
    x, W, labels = make_inputs(jax.random.PRNGKey(0), 16, 32, 256)
    loss, costh = amsoftmax_loss(x, W, labels, margin, scale,
                                 tb=8, tc=128, mm_dtype=jnp.float32)
    jax.block_until_ready((loss, costh))
    ref_loss, ref_costh = _reference(x, W, labels, margin, scale)
    assert jnp.allclose(loss, ref_loss, atol=1e-4, rtol=1e-4)
    assert jnp.allclose(costh, ref_costh, atol=1e-4, rtol=1e-4)

    # Case 2: same shapes, default bf16 MXU operands — loose check.
    loss_bf, costh_bf = amsoftmax_loss(x, W, labels, margin, scale, tb=8, tc=128)
    jax.block_until_ready((loss_bf, costh_bf))
    assert jnp.allclose(costh_bf, ref_costh, atol=2e-2)
    assert jnp.allclose(loss_bf, ref_loss, atol=1.5e-1)

    # Case 3: unaligned shapes — exercises batch/class padding + class masking.
    x2, W2, labels2 = make_inputs(jax.random.PRNGKey(1), 10, 24, 200)
    loss2, costh2 = amsoftmax_loss(x2, W2, labels2, margin, scale,
                                   tb=8, tc=128, mm_dtype=jnp.float32)
    jax.block_until_ready((loss2, costh2))
    ref_loss2, ref_costh2 = _reference(x2, W2, labels2, margin, scale)
    assert jnp.allclose(loss2, ref_loss2, atol=1e-4, rtol=1e-4)
    assert jnp.allclose(costh2, ref_costh2, atol=1e-4, rtol=1e-4)

    print("KERNEL_OK")
</pallas_src>

<mosaic_0001>
module attributes {stable_mosaic.version = 11 : i64} {
  func.func @_amsoftmax_kernel(%arg0: i32, %arg1: i32, %arg2: memref<8x32xf32, #tpu.memory_space<vmem>>, %arg3: memref<32x128xf32, #tpu.memory_space<vmem>>, %arg4: memref<1x128xf32, #tpu.memory_space<vmem>>, %arg5: memref<8x1xi32, #tpu.memory_space<vmem>>, %arg6: memref<8x128xf32, #tpu.memory_space<vmem>>, %arg7: memref<8x1xf32, #tpu.memory_space<vmem>>, %arg8: memref<8x32xf32, #tpu.memory_space<vmem>>, %arg9: memref<8x1xf32, #tpu.memory_space<vmem>>, %arg10: memref<8x1xf32, #tpu.memory_space<vmem>>, %arg11: memref<8x1xf32, #tpu.memory_space<vmem>>) attributes {dimension_semantics = [#tpu.dimension_semantics<parallel>, #tpu.dimension_semantics<arbitrary>], iteration_bounds = array<i64: 2, 2>, scalar_prefetch = 0 : i64, scratch_operands = 4 : i64, tpu.core_type = #tpu.core_type<tc>, window_params = [{transform_indices = @transform_0, window_bounds = array<i64: 8, 32>}, {transform_indices = @transform_1, window_bounds = array<i64: 32, 128>}, {transform_indices = @transform_2, window_bounds = array<i64: 1, 128>}, {transform_indices = @transform_3, window_bounds = array<i64: 8, 1>}, {transform_indices = @transform_4, window_bounds = array<i64: 8, 128>}, {transform_indices = @transform_5, window_bounds = array<i64: 8, 1>}]} {
    %c0_i32 = arith.constant 0 : i32
    %0 = arith.cmpi eq, %arg1, %c0_i32 : i32
    %1 = arith.extui %0 : i1 to i32
    %c0_i32_0 = arith.constant 0 : i32
    %2 = arith.cmpi ne, %1, %c0_i32_0 : i32
    scf.if %2 {
      %c0_30 = arith.constant 0 : index
      %c0_31 = arith.constant 0 : index
      %49 = vector.load %arg2[%c0_30, %c0_31] : memref<8x32xf32, #tpu.memory_space<vmem>>, vector<8x32xf32>
      %50 = arith.mulf %49, %49 : vector<8x32xf32>
      %cst_32 = arith.constant dense<0.000000e+00> : vector<8xf32>
      %51 = vector.multi_reduction <add>, %50, %cst_32 [1] : vector<8x32xf32> to vector<8xf32>
      %52 = vector.shape_cast %51 : vector<8xf32> to vector<8x1xf32>
      %cst_33 = arith.constant 1.000000e-24 : f32
      %53 = vector.broadcast %cst_33 : f32 to vector<8x1xf32>
      %54 = arith.maximumf %52, %53 : vector<8x1xf32>
      %55 = math.rsqrt %54 : vector<8x1xf32>
      %56 = vector.broadcast %55 : vector<8x1xf32> to vector<8x32xf32>
      %57 = arith.mulf %49, %56 : vector<8x32xf32>
      %c0_34 = arith.constant 0 : index
      %c0_35 = arith.constant 0 : index
      %58 = vector.load %arg8[%c0_34, %c0_35] : memref<8x32xf32, #tpu.memory_space<vmem>>, vector<8x32xf32>
      tpu.vector_store %arg8[%c0_34, %c0_35], %57 {strides = array<i32>} : memref<8x32xf32, #tpu.memory_space<vmem>>, vector<8x32xf32>,
      %cst_36 = arith.constant 0xFF800000 : f32
      %59 = vector.broadcast %cst_36 : f32 to vector<8x1xf32>
      %c0_37 = arith.constant 0 : index
      %c0_38 = arith.constant 0 : index
      %60 = vector.load %arg9[%c0_37, %c0_38] : memref<8x1xf32, #tpu.memory_space<vmem>>, vector<8x1xf32>
      tpu.vector_store %arg9[%c0_37, %c0_38], %59 {strides = array<i32>} : memref<8x1xf32, #tpu.memory_space<vmem>>, vector<8x1xf32>,
      %cst_39 = arith.constant 0.000000e+00 : f32
      %61 = vector.broadcast %cst_39 : f32 to vector<8x1xf32>
      %c0_40 = arith.constant 0 : index
      %c0_41 = arith.constant 0 : index
      %62 = vector.load %arg10[%c0_40, %c0_41] : memref<8x1xf32, #tpu.memory_space<vmem>>, vector<8x1xf32>
      tpu.vector_store %arg10[%c0_40, %c0_41], %61 {strides = array<i32>} : memref<8x1xf32, #tpu.memory_space<vmem>>, vector<8x1xf32>,
      %cst_42 = arith.constant 0.000000e+00 : f32
      %63 = vector.broadcast %cst_42 : f32 to vector<8x1xf32>
      %c0_43 = arith.constant 0 : index
      %c0_44 = arith.constant 0 : index
      %64 = vector.load %arg11[%c0_43, %c0_44] : memref<8x1xf32, #tpu.memory_space<vmem>>, vector<8x1xf32>
      tpu.vector_store %arg11[%c0_43, %c0_44], %63 {strides = array<i32>} : memref<8x1xf32, #tpu.memory_space<vmem>>, vector<8x1xf32>,
    } else {
    }
    %c0 = arith.constant 0 : index
    %c0_1 = arith.constant 0 : index
    %3 = vector.load %arg8[%c0, %c0_1] : memref<8x32xf32, #tpu.memory_space<vmem>>, vector<8x32xf32>
    %c0_2 = arith.constant 0 : index
    %c0_3 = arith.constant 0 : index
    %4 = vector.load %arg3[%c0_2, %c0_3] : memref<32x128xf32, #tpu.memory_space<vmem>>, vector<32x128xf32>
    %cst = arith.constant dense<0.000000e+00> : vector<8x128xf32>
    %5 = tpu.matmul %3, %4, %cst {dimension_numbers = #tpu.dot_dimension_numbers<[1], [0], [0], [1], [0, 0, 1, 1], [], []>} : vector<8x32xf32>, vector<32x128xf32>, vector<8x128xf32> -> vector<8x128xf32>
    %c0_4 = arith.constant 0 : index
    %c0_5 = arith.constant 0 : index
    %6 = vector.load %arg4[%c0_4, %c0_5] : memref<1x128xf32, #tpu.memory_space<vmem>>, vector<1x128xf32>
    %7 = vector.broadcast %6 : vector<1x128xf32> to vector<8x128xf32>
    %8 = arith.mulf %5, %7 : vector<8x128xf32>
    %c0_6 = arith.constant 0 : index
    %c0_7 = arith.constant 0 : index
    %9 = vector.load %arg6[%c0_6, %c0_7] : memref<8x128xf32, #tpu.memory_space<vmem>>, vector<8x128xf32>
    tpu.vector_store %arg6[%c0_6, %c0_7], %8 {strides = array<i32>} : memref<8x128xf32, #tpu.memory_space<vmem>>, vector<8x128xf32>,
    %c0_8 = arith.constant 0 : index
    %c0_9 = arith.constant 0 : index
    %10 = vector.load %arg5[%c0_8, %c0_9] : memref<8x1xi32, #tpu.memory_space<vmem>>, vector<8x1xi32>
    %c128_i32 = arith.constant 128 : i32
    %11 = arith.muli %arg1, %c128_i32 : i32
    %12 = tpu.iota {dimensions = array<i32: 1>} : vector<8x128xi32>
    %13 = vector.broadcast %11 : i32 to vector<8x128xi32>
    %14 = arith.addi %13, %12 : vector<8x128xi32>
    %15 = vector.broadcast %10 : vector<8x1xi32> to vector<8x128xi32>
    %16 = arith.cmpi eq, %14, %15 : vector<8x128xi32>
    %cst_10 = arith.constant 1.500000e+01 : f32
    %17 = vector.broadcast %cst_10 : f32 to vector<8x128xf32>
    %18 = arith.mulf %17, %8 : vector<8x128xf32>
    %cst_11 = arith.constant 4.500000e+00 : f32
    %cst_12 = arith.constant 0.000000e+00 : f32
    %19 = vector.broadcast %cst_11 : f32 to vector<8x128xf32>
    %20 = vector.broadcast %cst_12 : f32 to vector<8x128xf32>
    %21 = arith.select %16, %19, %20 : vector<8x128xi1>, vector<8x128xf32>
    %22 = arith.subf %18, %21 : vector<8x128xf32>
    %c0_13 = arith.constant 0 : index
    %c0_14 = arith.constant 0 : index
    %23 = vector.load %arg9[%c0_13, %c0_14] : memref<8x1xf32, #tpu.memory_space<vmem>>, vector<8x1xf32>
    %cst_15 = arith.constant dense<0xFF800000> : vector<8xf32>
    %24 = vector.multi_reduction <maximumf>, %22, %cst_15 [1] : vector<8x128xf32> to vector<8xf32>
    %25 = vector.shape_cast %24 : vector<8xf32> to vector<8x1xf32>
    %26 = arith.maximumf %23, %25 : vector<8x1xf32>
    %27 = arith.subf %23, %26 : vector<8x1xf32>
    %28 = math.exp %27 : vector<8x1xf32>
    %c0_16 = arith.constant 0 : index
    %c0_17 = arith.constant 0 : index
    %29 = vector.load %arg10[%c0_16, %c0_17] : memref<8x1xf32, #tpu.memory_space<vmem>>, vector<8x1xf32>
    %30 = arith.mulf %28, %29 : vector<8x1xf32>
    %31 = vector.broadcast %26 : vector<8x1xf32> to vector<8x128xf32>
    %32 = arith.subf %22, %31 : vector<8x128xf32>
    %33 = math.exp %32 : vector<8x128xf32>
    %cst_18 = arith.constant dense<0.000000e+00> : vector<8xf32>
    %34 = vector.multi_reduction <add>, %33, %cst_18 [1] : vector<8x128xf32> to vector<8xf32>
    %35 = vector.shape_cast %34 : vector<8xf32> to vector<8x1xf32>
    %36 = arith.addf %30, %35 : vector<8x1xf32>
    %c0_19 = arith.constant 0 : index
    %c0_20 = arith.constant 0 : index
    %37 = vector.load %arg10[%c0_19, %c0_20] : memref<8x1xf32, #tpu.memory_space<vmem>>, vector<8x1xf32>
    tpu.vector_store %arg10[%c0_19, %c0_20], %36 {strides = array<i32>} : memref<8x1xf32, #tpu.memory_space<vmem>>, vector<8x1xf32>,
    %c0_21 = arith.constant 0 : index
    %c0_22 = arith.constant 0 : index
    %38 = vector.load %arg11[%c0_21, %c0_22] : memref<8x1xf32, #tpu.memory_space<vmem>>, vector<8x1xf32>
    %cst_23 = arith.constant 0.000000e+00 : f32
    %39 = vector.broadcast %cst_23 : f32 to vector<8x128xf32>
    %40 = arith.select %16, %22, %39 : vector<8x128xi1>, vector<8x128xf32>
    %cst_24 = arith.constant dense<0.000000e+00> : vector<8xf32>
    %41 = vector.multi_reduction <add>, %40, %cst_24 [1] : vector<8x128xf32> to vector<8xf32>
    %42 = vector.shape_cast %41 : vector<8xf32> to vector<8x1xf32>
    %43 = arith.addf %38, %42 : vector<8x1xf32>
    %c0_25 = arith.constant 0 : index
    %c0_26 = arith.constant 0 : index
    %44 = vector.load %arg11[%c0_25, %c0_26] : memref<8x1xf32, #tpu.memory_space<vmem>>, vector<8x1xf32>
    tpu.vector_store %arg11[%c0_25, %c0_26], %43 {strides = array<i32>} : memref<8x1xf32, #tpu.memory_space<vmem>>, vector<8x1xf32>,
    %c0_27 = arith.constant 0 : index
    %c0_28 = arith.constant 0 : index
    %45 = vector.load %arg9[%c0_27, %c0_28] : memref<8x1xf32, #tpu.memory_space<vmem>>, vector<8x1xf32>
    tpu.vector_store %arg9[%c0_27, %c0_28], %26 {strides = array<i32>} : memref<8x1xf32, #tpu.memory_space<vmem>>, vector<8x1xf32>,
    %c1_i32 = arith.constant 1 : i32
    %46 = arith.cmpi eq, %arg1, %c1_i32 : i32
    %47 = arith.extui %46 : i1 to i32
    %c0_i32_29 = arith.constant 0 : i32
    %48 = arith.cmpi ne, %47, %c0_i32_29 : i32
    scf.if %48 {
      %c0_30 = arith.constant 0 : index
      %c0_31 = arith.constant 0 : index
      %49 = vector.load %arg9[%c0_30, %c0_31] : memref<8x1xf32, #tpu.memory_space<vmem>>, vector<8x1xf32>
      %c0_32 = arith.constant 0 : index
      %c0_33 = arith.constant 0 : index
      %50 = vector.load %arg10[%c0_32, %c0_33] : memref<8x1xf32, #tpu.memory_space<vmem>>, vector<8x1xf32>
      %51 = math.log %50 : vector<8x1xf32>
      %52 = arith.addf %49, %51 : vector<8x1xf32>
      %c0_34 = arith.constant 0 : index
      %c0_35 = arith.constant 0 : index
      %53 = vector.load %arg11[%c0_34, %c0_35] : memref<8x1xf32, #tpu.memory_space<vmem>>, vector<8x1xf32>
      %54 = arith.subf %52, %53 : vector<8x1xf32>
      %c0_36 = arith.constant 0 : index
      %c0_37 = arith.constant 0 : index
      %55 = vector.load %arg7[%c0_36, %c0_37] : memref<8x1xf32, #tpu.memory_space<vmem>>, vector<8x1xf32>
      tpu.vector_store %arg7[%c0_36, %c0_37], %54 {strides = array<i32>} : memref<8x1xf32, #tpu.memory_space<vmem>>, vector<8x1xf32>,
    } else {
    }
    return
  }
  func.func @transform_0(%arg0: i32, %arg1: i32) -> (i32, i32) {
    %c0_i32 = arith.constant 0 : i32
    %c0_i32_0 = arith.constant 0 : i32
    return %arg0, %c0_i32 : i32, i32
  }
  func.func @transform_1(%arg0: i32, %arg1: i32) -> (i32, i32) {
    %c0_i32 = arith.constant 0 : i32
    %c0_i32_0 = arith.constant 0 : i32
    return %c0_i32, %arg1 : i32, i32
  }
  func.func @transform_2(%arg0: i32, %arg1: i32) -> (i32, i32) {
    %c0_i32 = arith.constant 0 : i32
    %c0_i32_0 = arith.constant 0 : i32
    return %c0_i32, %arg1 : i32, i32
  }
  func.func @transform_3(%arg0: i32, %arg1: i32) -> (i32, i32) {
    %c0_i32 = arith.constant 0 : i32
    %c0_i32_0 = arith.constant 0 : i32
    return %arg0, %c0_i32 : i32, i32
  }
  func.func @transform_4(%arg0: i32, %arg1: i32) -> (i32, i32) {
    %c0_i32 = arith.constant 0 : i32
    return %arg0, %arg1 : i32, i32
  }
  func.func @transform_5(%arg0: i32, %arg1: i32) -> (i32, i32) {
    %c0_i32 = arith.constant 0 : i32
    %c0_i32_0 = arith.constant 0 : i32
    return %arg0, %c0_i32 : i32, i32
  }
}

</mosaic_0001>

<llo_original>
// kernel: tpu_custom_call.1
$region0: #{tpu_custom_call.1}
  #allocation0 [shape = 'u32[]', space=smem, size = 0x4, offset = 0x4, fixed_abs, tag = 'smem constant byte address 0x4 - core index']
  #allocation1 [shape = 'u32[72,128]{1,0:T(1,128)}', space=vmem, size = 0x9000, scoped, tag = 'internal scratch']
  #allocation2 [shape = 'f32[8,32]{1,0:T(8,128)}', space=vmem, size = 0x1000, scoped, tag = 'scratch operand']
  #allocation3 [shape = 'f32[8,1]{1,0:T(8,128)}', space=vmem, size = 0x1000, scoped, tag = 'scratch operand']
  #allocation4 [shape = 'f32[8,1]{1,0:T(8,128)}', space=vmem, size = 0x1000, scoped, tag = 'scratch operand']
  #allocation5 [shape = 'f32[8,1]{1,0:T(8,128)}', space=vmem, size = 0x1000, scoped, tag = 'scratch operand']
  %s0 = inlined_call_operand.vmem [shape: f32[16,32], index: 0, kind: input, shape index: {}]
  %s1 = inlined_call_operand.hbm [shape: f32[32,256], index: 1, kind: input, shape index: {}]
  %s2 = inlined_call_operand.hbm [shape: f32[1,256], index: 2, kind: input, shape index: {}]
  %s3 = inlined_call_operand.vmem [shape: s32[16,1], index: 3, kind: input, shape index: {}]
  %s4 = inlined_call_operand.hbm [shape: f32[16,256], index: 4, kind: output, shape index: {0}]
  %s5 = inlined_call_operand.vmem [shape: f32[16,1], index: 5, kind: output, shape index: {1}]
  %6 = xla_tuple %s4, %s5
  %s7 = sld [smem:[#allocation0]]
  $region73: #{tpu_custom_call.1} parent=0
    _
  %s9 = ssub.s32 1, %s7
  %s10 = scalar_select 0, %s9, %s7
  $region1: #{tpu_custom_call.1} parent=0
    #allocation6 [shape = 'u8[32768]{0}', space=vmem, size = 0x8000, scoped, tag = 'input window, operand 1']
    #allocation7 [shape = 's32[2]{0}', space=sflag, size = 0x8, scoped, tag = 'scoped memory for tpu_custom_call.1']
    #allocation8 [shape = 's32[2]{0}', space=sflag, size = 0x8, scoped, tag = 'scoped memory for tpu_custom_call.1']
    #allocation9 [shape = 'u8[1024]{0}', space=vmem, size = 0x400, scoped, tag = 'input window, operand 2']
    #allocation10 [shape = 's32[2]{0}', space=sflag, size = 0x8, scoped, tag = 'scoped memory for tpu_custom_call.1']
    #allocation11 [shape = 'u8[8192]{0}', space=vmem, size = 0x2000, scoped, tag = 'output window, operand 0']
    %11 = vsyncpa [#allocation7], 0
    %s12 = scalar_lea.sflag [#allocation7], 1
    %13 = vsyncpa %s12, 0
    %14 = vsyncpa [#allocation10], 0
    %s15 = scalar_lea.sflag [#allocation10], 1
    %16 = vsyncpa %s15, 0
    %17 = vsyncpa [#allocation8], 0
    %s18 = scalar_lea.sflag [#allocation8], 1
    %19 = vsyncpa %s18, 0
    loop: start=0, step=1, limit=6
    $region2: #{tpu_custom_call.1} parent=1 // loop_pre_header
      _
    $region3: #{tpu_custom_call.1} parent=1 // loop_header
      %s21 = sphi 0, %s25
      %p22 = scmp.ge.s32.totalorder %s21, 6
      %s28 = sphi 0, %s40
      %s29 = sphi 0, %s36
      %s30 = sphi 0, %s28
      %s31 = sphi 0, %s29
      %s32 = sphi 0, %s30
      %s33 = sphi 0, %s31
      %s43 = sphi 0, %s45
      %s46 = sphi 0, %s43
      %s47 = sphi 0, %s46
      %s63 = sphi 0, %s47
      %s69 = sphi 0, %s71
      %s72 = sphi 0, %s69
      %s73 = sphi 0, %s72
      %s89 = sphi 0, %s73
      %s95 = sphi 0, %s97
      %s98 = sphi 0, %s95
      %s99 = sphi 0, %s98
      %s115 = sphi 0, %s99
      %s121 = sphi 0, %s123
      %s124 = sphi 0, %s121
      %s125 = sphi 0, %s124
      %s141 = sphi 0, %s125
      %s149 = sphi 0, %s151
      %s152 = sphi 0, %s149
      %s153 = sphi 0, %s152
      %s169 = sphi 0, %s153
      %s175 = sphi 0, %s177
      %s178 = sphi 0, %s175
      %s179 = sphi 0, %s178
      %s195 = sphi 0, %s179
    $region4: #{tpu_custom_call.1} parent=1 // loop_header_branch
      %24 = sbr.rel (%p22) target = $region8
    $region5: #{tpu_custom_call.1} parent=1 // loop_body
      %s26 = ssub.s32 %s21, 1
      %s27 = ssub.s32 %s21, 2
      %s34 = sadd.s32 1, %s29
      %p35 = scmp.ge.s32.totalorder %s34, 2
      %s36 = scalar_select %p35, 0, %s34
      %s37 = sadd.s32 1, %s28
      %s38 = scalar_select %p35, %s37, %s28
      %p39 = scmp.ge.s32.totalorder %s38, 2
      %s40 = scalar_select %p39, 0, %s38
      %s41 = ssub.s32 %s28, %s40
      %p42 = scmp.eq.s32.totalorder %s41, 0
      %s44 = sadd.s32 %s43, 1
      %s45 = scalar_select %p42, %s43, %s44
      %p48 = pneg %p42
      %p49 = scmp.eq.s32.totalorder %s21, 3
      %p50 = por %p48, %p49
      %p51 = scmp.ne.s32.totalorder %s43, %s46
      %p52 = scmp.eq.s32.totalorder %s21, 0
      %p53 = por %p51, %p52
      %p54 = scmp.ne.s32.totalorder %s43, %s46
      %p55 = scmp.eq.s32.totalorder %s26, 3
      %p56 = por %p54, %p55
      %p57 = scmp.ne.s32.totalorder %s46, %s47
      %p58 = scmp.eq.s32.totalorder %s26, 0
      %p59 = por %p57, %p58
      %p60 = scmp.ne.s32.totalorder %s46, %s47
      %p61 = scmp.eq.s32.totalorder %s27, 3
      %p62 = por %p60, %p61
      %p64 = scmp.ne.s32.totalorder %s47, %s63
      %p65 = scmp.eq.s32.totalorder %s27, 0
      %p66 = por %p64, %p65
      %s67 = ssub.s32 %s29, %s36
      %p68 = scmp.eq.s32.totalorder %s67, 0
      %s70 = sadd.s32 %s69, 1
      %s71 = scalar_select %p68, %s69, %s70
      %p74 = pneg %p68
      %p75 = scmp.eq.s32.totalorder %s21, 3
      %p76 = por %p74, %p75
      %p77 = scmp.ne.s32.totalorder %s69, %s72
      %p78 = scmp.eq.s32.totalorder %s21, 0
      %p79 = por %p77, %p78
      %p80 = scmp.ne.s32.totalorder %s69, %s72
      %p81 = scmp.eq.s32.totalorder %s26, 3
      %p82 = por %p80, %p81
      %p83 = scmp.ne.s32.totalorder %s72, %s73
      %p84 = scmp.eq.s32.totalorder %s26, 0
      %p85 = por %p83, %p84
      %p86 = scmp.ne.s32.totalorder %s72, %s73
      %p87 = scmp.eq.s32.totalorder %s27, 3
      %p88 = por %p86, %p87
      %p90 = scmp.ne.s32.totalorder %s73, %s89
      %p91 = scmp.eq.s32.totalorder %s27, 0
      %p92 = por %p90, %p91
      %s93 = ssub.s32 %s29, %s36
      %p94 = scmp.eq.s32.totalorder %s93, 0
      %s96 = sadd.s32 %s95, 1
      %s97 = scalar_select %p94, %s95, %s96
      %p100 = pneg %p94
      %p101 = scmp.eq.s32.totalorder %s21, 3
      %p102 = por %p100, %p101
      %p103 = scmp.ne.s32.totalorder %s95, %s98
      %p104 = scmp.eq.s32.totalorder %s21, 0
      %p105 = por %p103, %p104
      %p106 = scmp.ne.s32.totalorder %s95, %s98
      %p107 = scmp.eq.s32.totalorder %s26, 3
      %p108 = por %p106, %p107
      %p109 = scmp.ne.s32.totalorder %s98, %s99
      %p110 = scmp.eq.s32.totalorder %s26, 0
      %p111 = por %p109, %p110
      %p112 = scmp.ne.s32.totalorder %s98, %s99
      %p113 = scmp.eq.s32.totalorder %s27, 3
      %p114 = por %p112, %p113
      %p116 = scmp.ne.s32.totalorder %s99, %s115
      %p117 = scmp.eq.s32.totalorder %s27, 0
      %p118 = por %p116, %p117
      %s119 = ssub.s32 %s28, %s40
      %p120 = scmp.eq.s32.totalorder %s119, 0
      %s122 = sadd.s32 %s121, 1
      %s123 = scalar_select %p120, %s121, %s122
      %p126 = pneg %p120
      %p127 = scmp.eq.s32.totalorder %s21, 3
      %p128 = por %p126, %p127
      %p129 = scmp.ne.s32.totalorder %s121, %s124
      %p130 = scmp.eq.s32.totalorder %s21, 0
      %p131 = por %p129, %p130
      %p132 = scmp.ne.s32.totalorder %s121, %s124
      %p133 = scmp.eq.s32.totalorder %s26, 3
      %p134 = por %p132, %p133
      %p135 = scmp.ne.s32.totalorder %s124, %s125
      %p136 = scmp.eq.s32.totalorder %s26, 0
      %p137 = por %p135, %p136
      %p138 = scmp.ne.s32.totalorder %s124, %s125
      %p139 = scmp.eq.s32.totalorder %s27, 3
      %p140 = por %p138, %p139
      %p142 = scmp.ne.s32.totalorder %s125, %s141
      %p143 = scmp.eq.s32.totalorder %s27, 0
      %p144 = por %p142, %p143
      %s145 = ssub.s32 %s28, %s40
      %s146 = ssub.s32 %s29, %s36
      %s147 = sor.u32 %s145, %s146
      %p148 = scmp.eq.s32.totalorder %s147, 0
      %s150 = sadd.s32 %s149, 1
      %s151 = scalar_select %p148, %s149, %s150
      %p154 = pneg %p148
      %p155 = scmp.eq.s32.totalorder %s21, 3
      %p156 = por %p154, %p155
      %p157 = scmp.ne.s32.totalorder %s149, %s152
      %p158 = scmp.eq.s32.totalorder %s21, 0
      %p159 = por %p157, %p158
      %p160 = scmp.ne.s32.totalorder %s149, %s152
      %p161 = scmp.eq.s32.totalorder %s26, 3
      %p162 = por %p160, %p161
      %p163 = scmp.ne.s32.totalorder %s152, %s153
      %p164 = scmp.eq.s32.totalorder %s26, 0
      %p165 = por %p163, %p164
      %p166 = scmp.ne.s32.totalorder %s152, %s153
      %p167 = scmp.eq.s32.totalorder %s27, 3
      %p168 = por %p166, %p167
      %p170 = scmp.ne.s32.totalorder %s153, %s169
      %p171 = scmp.eq.s32.totalorder %s27, 0
      %p172 = por %p170, %p171
      %s173 = ssub.s32 %s28, %s40
      %p174 = scmp.eq.s32.totalorder %s173, 0
      %s176 = sadd.s32 %s175, 1
      %s177 = scalar_select %p174, %s175, %s176
      %p180 = pneg %p174
      %p181 = scmp.eq.s32.totalorder %s21, 3
      %p182 = por %p180, %p181
      %p183 = scmp.ne.s32.totalorder %s175, %s178
      %p184 = scmp.eq.s32.totalorder %s21, 0
      %p185 = por %p183, %p184
      %p186 = scmp.ne.s32.totalorder %s175, %s178
      %p187 = scmp.eq.s32.totalorder %s26, 3
      %p188 = por %p186, %p187
      %p189 = scmp.ne.s32.totalorder %s178, %s179
      %p190 = scmp.eq.s32.totalorder %s26, 0
      %p191 = por %p189, %p190
      %p192 = scmp.ne.s32.totalorder %s178, %s179
      %p193 = scmp.eq.s32.totalorder %s27, 3
      %p194 = por %p192, %p193
      %p196 = scmp.ne.s32.totalorder %s179, %s195
      %p197 = scmp.eq.s32.totalorder %s27, 0
      %p198 = por %p196, %p197
      %p199 = scmp.le.s32.totalorder 1, %s21
      %p200 = scmp.lt.s32.totalorder %s21, 5
      %p201 = pnand %p199, %p200
      %p202 = pneg %p201
      // Predicated region
      $region9: #{tpu_custom_call.1} parent=5 // pred_check
        _
      $region10: #{tpu_custom_call.1} parent=5 // pred_check_branch
        %204 = sbr.rel (%p201) target = $region12
      $region11: #{tpu_custom_call.1} parent=5 // pred_region
        %s205 = ssub.s32 %s21, 1
      $region12: #{tpu_custom_call.1} parent=5 // pred_fallthru
        _
      %p206 = scmp.lt.s32.totalorder %s21, 4
      // Predicated region
      $region13: #{tpu_custom_call.1} parent=5 // pred_check
        %p207 = pneg %p206
      $region14: #{tpu_custom_call.1} parent=5 // pred_check_branch
        %209 = sbr.rel (%p207) target = $region16
      $region15: #{tpu_custom_call.1} parent=5 // pred_region
        // Predicated region
        $region17: #{tpu_custom_call.1} parent=15 // pred_check
          %p210 = pneg %p53
        $region18: #{tpu_custom_call.1} parent=15 // pred_check_branch
          %212 = sbr.rel (%p210) target = $region20
        $region19: #{tpu_custom_call.1} parent=15 // pred_region
          %p213 = scmp.lt.s32.totalorder %s28, 1
          %s214 = scalar_select %p213, %s28, 1
          %s215 = smul.addr %s214, 8
          %s216 = scalar_lea.vmem %s0, %s215
        $region20: #{tpu_custom_call.1} parent=15 // pred_fallthru
          _
        // Predicated region
        $region21: #{tpu_custom_call.1} parent=15 // pred_check
          %p217 = pneg %p79
        $region22: #{tpu_custom_call.1} parent=15 // pred_check_branch
          %219 = sbr.rel (%p217) target = $region24
        $region23: #{tpu_custom_call.1} parent=15 // pred_region
          %s220 = sand.u32 %s69, 1
          %s221 = scalar_lea.sflag [#allocation7], %s220
          %s222 = sand.u32 %s69, 1
          %s223 = smul.addr %s222, 32
          %s224 = scalar_lea.vmem [#allocation6], %s223
          %226 = vsyncadd %s221, 0
          %s227 = smul.addr %s29, 8
          %s228 = scalar_lea.hbm %s1, %s227
          %s229 = sshll.u32 %s228, 4
          %s230 = int_to_ptr.hbm [resolvable:$true] %s229
          %s231 = sshll.u32 %s224, 4
          %s232 = int_to_ptr.vmem [resolvable:$true] %s231
          %237 = dma.hbm_to_vmem [thread:$0]  %s230, 512, %s232, %s221, 256, 128, 8
        $region24: #{tpu_custom_call.1} parent=15 // pred_fallthru
          _
        // Predicated region
        $region25: #{tpu_custom_call.1} parent=15 // pred_check
          %p238 = pneg %p105
        $region26: #{tpu_custom_call.1} parent=15 // pred_check_branch
          %240 = sbr.rel (%p238) target = $region28
        $region27: #{tpu_custom_call.1} parent=15 // pred_region
          %s241 = sand.u32 %s95, 1
          %s242 = scalar_lea.sflag [#allocation10], %s241
          %s243 = sand.u32 %s95, 1
          %s244 = scalar_lea.vmem [#allocation9], %s243
          %246 = vsyncadd %s242, 0
          %s247 = scalar_lea.hbm %s2, %s29
          %s249 = sshll.u32 %s247, 4
          %s250 = int_to_ptr.hbm [resolvable:$true] %s249
          %s251 = sshll.u32 %s244, 4
          %s252 = int_to_ptr.vmem [resolvable:$true] %s251
          %254 = dma.hbm_to_vmem [thread:$0]  %s250, 16, %s252, %s242
        $region28: #{tpu_custom_call.1} parent=15 // pred_fallthru
          _
        // Predicated region
        $region29: #{tpu_custom_call.1} parent=15 // pred_check
          %p255 = pneg %p131
        $region30: #{tpu_custom_call.1} parent=15 // pred_check_branch
          %257 = sbr.rel (%p255) target = $region32
        $region31: #{tpu_custom_call.1} parent=15 // pred_region
          %p258 = scmp.lt.s32.totalorder %s28, 1
          %s259 = scalar_select %p258, %s28, 1
          %s260 = smul.addr %s259, 8
          %s261 = scalar_lea.vmem %s3, %s260
        $region32: #{tpu_custom_call.1} parent=15 // pred_fallthru
          _
      $region16: #{tpu_custom_call.1} parent=5 // pred_fallthru
        _
      %p262 = scmp.le.s32.totalorder 1, %s21
      %p263 = scmp.lt.s32.totalorder %s21, 5
      %p264 = pnand %p262, %p263
      %p265 = pneg %p264
      // Predicated region
      $region33: #{tpu_custom_call.1} parent=5 // pred_check
        _
      $region34: #{tpu_custom_call.1} parent=5 // pred_check_branch
        %267 = sbr.rel (%p264) target = $region36
      $region35: #{tpu_custom_call.1} parent=5 // pred_region
        %s268 = ssub.s32 %s21, 1
        %s269 = sand.u32 %s72, 1
        %s270 = scalar_lea.sflag [#allocation7], %s269
        %s271 = sand.u32 %s72, 1
        %s272 = smul.addr %s271, 32
        %s273 = scalar_lea.vmem [#allocation6], %s272
        // Predicated region
        $region37: #{tpu_custom_call.1} parent=35 // pred_check
          %p274 = pneg %p85
        $region38: #{tpu_custom_call.1} parent=35 // pred_check_branch
          %276 = sbr.rel (%p274) target = $region40
        $region39: #{tpu_custom_call.1} parent=35 // pred_region
          %278 = dma.done %s270, 512
        $region40: #{tpu_custom_call.1} parent=35 // pred_fallthru
          _
        %s279 = sand.u32 %s98, 1
        %s280 = scalar_lea.sflag [#allocation10], %s279
        %s281 = sand.u32 %s98, 1
        %s282 = scalar_lea.vmem [#allocation9], %s281
        // Predicated region
        $region41: #{tpu_custom_call.1} parent=35 // pred_check
          %p283 = pneg %p111
        $region42: #{tpu_custom_call.1} parent=35 // pred_check_branch
          %285 = sbr.rel (%p283) target = $region44
        $region43: #{tpu_custom_call.1} parent=35 // pred_region
          %287 = dma.done %s280, 16
        $region44: #{tpu_custom_call.1} parent=35 // pred_fallthru
          _
        %p288 = scmp.lt.s32.totalorder %s30, 1
        %s289 = scalar_select %p288, %s30, 1
        %s290 = smul.addr %s289, 8
        %s291 = scalar_lea.vmem %s0, %s290
        %p292 = pneg %p59
        %p293 = pneg %p56
        %s294 = sand.u32 %s72, 1
        %s295 = scalar_lea.sflag [#allocation7], %s294
        %s296 = sand.u32 %s72, 1
        %s297 = smul.addr %s296, 32
        %s298 = scalar_lea.vmem [#allocation6], %s297
        %p299 = pneg %p85
        %p300 = pneg %p82
        %s301 = sand.u32 %s98, 1
        %s302 = scalar_lea.sflag [#allocation10], %s301
        %s303 = sand.u32 %s98, 1
        %s304 = scalar_lea.vmem [#allocation9], %s303
        %p305 = pneg %p111
        %p306 = pneg %p108
        %p307 = scmp.lt.s32.totalorder %s30, 1
        %s308 = scalar_select %p307, %s30, 1
        %s309 = smul.addr %s308, 8
        %s310 = scalar_lea.vmem %s3, %s309
        %p311 = pneg %p137
        %p312 = pneg %p134
        %p313 = pneg %p165
        %p314 = pneg %p162
        %s315 = sand.u32 %s152, 1
        %s316 = scalar_lea.sflag [#allocation8], %s315
        %s317 = sand.u32 %s152, 1
        %s318 = smul.addr %s317, 8
        %s319 = scalar_lea.vmem [#allocation11], %s318
        %p320 = pneg %p191
        %p321 = pneg %p188
        %p322 = scmp.lt.s32.totalorder %s30, 1
        %s323 = scalar_select %p322, %s30, 1
        %s324 = smul.addr %s323, 8
        %s325 = scalar_lea.vmem %s5, %s324
        %p326 = scmp.lt.s32.totalorder %s30, 1
        %s327 = scalar_select %p326, %s30, 1
        %s328 = smul.addr %s327, 8
        %s329 = scalar_lea.vmem %s0, %s328
        %p330 = scmp.lt.s32.totalorder %s30, 1
        %s331 = scalar_select %p330, %s30, 1
        %s332 = smul.addr %s331, 8
        %s333 = scalar_lea.vmem %s3, %s332
        %p334 = scmp.lt.s32.totalorder %s30, 1
        %s335 = scalar_select %p334, %s30, 1
        %s336 = smul.addr %s335, 8
        %s337 = scalar_lea.vmem %s5, %s336
        %p338 = scmp.eq.s32.totalorder %s31, 0
        // Predicated region
        $region45: #{tpu_custom_call.1} parent=35 // pred_check
          %p339 = pneg %p338
        $region46: #{tpu_custom_call.1} parent=35 // pred_check_branch
          %341 = sbr.rel (%p339) target = $region48
        $region47: #{tpu_custom_call.1} parent=35 // pred_region
          %v342 = vld [vmem:[%s329] sm:$0xff]
          %v343 = vmul.f32 %v342, %v342
          %vm344 = vcmask 261120
          %v345 = vsel %vm344, %v343, 0.0
          %346 = vadd.xlane.f32.xlu0 %v345
          %v347 = vpop.xlane.xlu0 %346
          %v348 = vmax.f32 %v347, 1e-24
          %v349 = vrsqrt.pop %v348
          %v350 = vmul.f32 %v349, %v348
          %v351 = vmul.f32 %v350, %v349
          %v352 = vmul.f32 0.5, %v351
          %v353 = vsub.f32 1.5, %v352
          %v354 = vmul.f32 %v349, %v353
          %vm355 = vweird.f32 %v348
          %vm356 = vweird.f32 %v349
          %vm357 = vmor %vm355, %vm356
          %v358 = vsel %vm357, %v349, %v354
          %v359 = vmul.f32 %v342, %v358
          %360 = vst.msk [vmem:[#allocation2] sm:$0xff] %vm344, %v359
          %vm361 = vcmask 7168
          %362 = vst.msk [vmem:[#allocation3] sm:$0xff] %vm361, -inf
          %363 = vst.msk [vmem:[#allocation4] sm:$0xff] %vm361, 0.0
          %364 = vst.msk [vmem:[#allocation5] sm:$0xff] %vm361, 0.0
        $region48: #{tpu_custom_call.1} parent=35 // pred_fallthru
          _
        %v365 = vld [vmem:[#allocation2] sm:$0xff]
        %v366 = vld [vmem:[%s273] sm:$0xff]
        %v367 = vld [vmem:[%s273 + $0x8] sm:$0xff]
        %v368 = vld [vmem:[%s273 + $0x10] sm:$0xff]
        %v369 = vld [vmem:[%s273 + $0x18] sm:$0xff]
        %vm370 = vcmask 261120
        %v372 = vsel %vm370, %v365, 0
        %374 = vmatpush.msra.mxu0 0.0
        %375 = vmatpush.msra.mxu0 0.0
        %376 = vmatpush.msra.mxu0 0.0
        %377 = vmatpush.msra.mxu0 0.0
        %378 = vmatpush.msra.mxu0 0.0
        %379 = vmatpush.msra.mxu0 0.0
        %380 = vmatpush.msra.mxu0 0.0
        %381 = vmatpush.msra.mxu0 0.0
        %382 = vmatpush.msra.mxu0 0.0
        %383 = vmatpush.msra.mxu0 0.0
        %384 = vmatpush.msra.mxu0 0.0
        %385 = vmatpush.msra.mxu0 0.0
        %386 = vmatpush.msra.mxu0 %v369
        %387 = vmatpush.msra.mxu0 %v368
        %388 = vmatpush.msra.mxu0 %v367
        %389 = vmatpush.msra.mxu0 %v366
        %390 = vmatmul.f32.gmra.mxu0 %v372
        %v391 = vpop.f32.mrf.mxu0
        %v392 = vadd.f32 0.0, %v391
        %393 = vdwg.mxu0
        %v394 = vld [vmem:[%s282] sm:$0x1]
        %v396 = vperm.slane %v394, 0
        %v398 = vmul.f32 %v392, %v396
        %399 = vst [vmem:[%s319] sm:$0xff] %v398
        %v400 = vld [vmem:[%s333] sm:$0xff]
        %s401 = smul.u32 %s31, 128
        %v402 = vlaneseq
        %v403 = vand.u32 %v402, 127
        %v404 = vstv %s401
        %v405 = vadd.s32 %v404, %v403
        %406 = vset.pattern.permute.xlu0 0
        %407 = vperm.xlu0 %406, %v400
        %v408 = vpop.permute.xlu0 %407
        %vm409 = vcmp.eq.s32.totalorder %v405, %v408
        %v410 = vmul.f32 %v398, 15.0
        %v411 = vsel %vm409, 4.5, 0.0
        %v412 = vsub.f32 %v410, %v411
        %v413 = vld [vmem:[#allocation3] sm:$0xff]
        %414 = vmax.xlane.f32.xlu0 %v412
        %v415 = vpop.xlane.xlu0 %414
        %v416 = vmax.f32 %v413, %v415
        %v417 = vsub.f32 %v413, %v416
        %v418 = vmul.f32 %v417, 1.442695
        %v419 = vpow.pop %v418
        %v420 = vld [vmem:[#allocation4] sm:$0xff]
        %v421 = vmul.f32 %v419, %v420
        %423 = vset.pattern.permute.xlu0 0
        %424 = vperm.xlu0 %423, %v416
        %v425 = vpop.permute.xlu0 %424
        %v427 = vsub.f32 %v412, %v425
        %v428 = vmul.f32 %v427, 1.442695
        %v429 = vpow.pop %v428
        %430 = vadd.xlane.f32.xlu0 %v429
        %v431 = vpop.xlane.xlu0 %430
        %v432 = vadd.f32 %v421, %v431
        %vm433 = vcmask 7168
        %434 = vst.msk [vmem:[#allocation4] sm:$0xff] %vm433, %v432
        %v435 = vld [vmem:[#allocation5] sm:$0xff]
        %v436 = vsel %vm409, %v412, 0.0
        %437 = vadd.xlane.f32.xlu0 %v436
        %v438 = vpop.xlane.xlu0 %437
        %v439 = vadd.f32 %v435, %v438
        %440 = vst.msk [vmem:[#allocation5] sm:$0xff] %vm433, %v439
        %441 = vst.msk [vmem:[#allocation3] sm:$0xff] %vm433, %v416
        %p442 = scmp.eq.s32.totalorder %s31, 1
        // Predicated region
        $region49: #{tpu_custom_call.1} parent=35 // pred_check
          %p443 = pneg %p442
        $region50: #{tpu_custom_call.1} parent=35 // pred_check_branch
          %445 = sbr.rel (%p443) target = $region52
        $region51: #{tpu_custom_call.1} parent=35 // pred_region
          %v446 = vld [vmem:[#allocation3] sm:$0xff]
          %v447 = vld [vmem:[#allocation4] sm:$0xff]
          %v448 = vlog2.pop %v447
          %v449 = vmul.f32 %v448, 0.6931472
          %v450 = vadd.f32 %v446, %v449
          %v451 = vld [vmem:[#allocation5] sm:$0xff]
          %v452 = vsub.f32 %v450, %v451
          %453 = vst.msk [vmem:[%s337] sm:$0xff] %vm433, %v452
        $region52: #{tpu_custom_call.1} parent=35 // pred_fallthru
          _
        %s454 = sand.u32 %s152, 1
        %s455 = scalar_lea.sflag [#allocation8], %s454
        %s456 = sand.u32 %s152, 1
        %s457 = smul.addr %s456, 8
        %s458 = scalar_lea.vmem [#allocation11], %s457
        %p459 = scmp.lt.s32.totalorder %s30, 1
        %s460 = scalar_select %p459, %s30, 1
        %s461 = smul.addr %s460, 8
        %s462 = scalar_lea.vmem %s5, %s461
        // Predicated region
        $region53: #{tpu_custom_call.1} parent=35 // pred_check
          %p463 = pneg %p162
        $region54: #{tpu_custom_call.1} parent=35 // pred_check_branch
          %465 = sbr.rel (%p463) target = $region56
        $region55: #{tpu_custom_call.1} parent=35 // pred_region
          %467 = vsyncadd %s455, 0
          %s468 = smul.addr %s30, 2
          %s469 = sadd.s32 %s31, %s468
          %s470 = smul.addr %s469, 8
          %s471 = scalar_lea.hbm %s4, %s470
          %s473 = sshll.u32 %s458, 4
          %s474 = int_to_ptr.vmem [resolvable:$true] %s473
          %s475 = sshll.u32 %s471, 4
          %s476 = int_to_ptr.hbm [resolvable:$true] %s475
          %478 = dma.vmem_to_hbm [thread:$0]  %s474, 128, %s476, %s455
        $region56: #{tpu_custom_call.1} parent=35 // pred_fallthru
          _
        // Predicated region
        $region57: #{tpu_custom_call.1} parent=35 // pred_check
          %p479 = pneg %p188
        $region58: #{tpu_custom_call.1} parent=35 // pred_check_branch
          %481 = sbr.rel (%p479) target = $region60
        $region59: #{tpu_custom_call.1} parent=35 // pred_region
          _
        $region60: #{tpu_custom_call.1} parent=35 // pred_fallthru
          _
      $region36: #{tpu_custom_call.1} parent=5 // pred_fallthru
        _
      %p482 = scmp.le.s32.totalorder 2, %s21
      // Predicated region
      $region61: #{tpu_custom_call.1} parent=5 // pred_check
        %p483 = pneg %p482
      $region62: #{tpu_custom_call.1} parent=5 // pred_check_branch
        %485 = sbr.rel (%p483) target = $region64
      $region63: #{tpu_custom_call.1} parent=5 // pred_region
        %s486 = ssub.s32 %s21, 2
        // Predicated region
        $region65: #{tpu_custom_call.1} parent=63 // pred_check
          %p487 = pneg %p168
        $region66: #{tpu_custom_call.1} parent=63 // pred_check_branch
          %489 = sbr.rel (%p487) target = $region68
        $region67: #{tpu_custom_call.1} parent=63 // pred_region
          %s490 = sand.u32 %s153, 1
          %s491 = scalar_lea.sflag [#allocation8], %s490
          %s492 = sand.u32 %s153, 1
          %s493 = smul.addr %s492, 8
          %s494 = scalar_lea.vmem [#allocation11], %s493
          %496 = dma.done %s491, 128
        $region68: #{tpu_custom_call.1} parent=63 // pred_fallthru
          _
        // Predicated region
        $region69: #{tpu_custom_call.1} parent=63 // pred_check
          %p497 = pneg %p194
        $region70: #{tpu_custom_call.1} parent=63 // pred_check_branch
          %499 = sbr.rel (%p497) target = $region72
        $region71: #{tpu_custom_call.1} parent=63 // pred_region
          %p500 = scmp.lt.s32.totalorder %s32, 1
          %s501 = scalar_select %p500, %s32, 1
          %s502 = smul.addr %s501, 8
          %s503 = scalar_lea.vmem %s5, %s502
        $region72: #{tpu_custom_call.1} parent=63 // pred_fallthru
          _
      $region64: #{tpu_custom_call.1} parent=5 // pred_fallthru
        _
    $region6: #{tpu_custom_call.1} parent=1 // loop_footer
      %s25 = sadd.s32 1, %s21
    $region7: #{tpu_custom_call.1} parent=1 // loop_footer_branch
      %20 = sbr.rel target = $region3
    $region8: #{tpu_custom_call.1} parent=1 // loop_exit
      _
    %504 = vsyncpa [#allocation7], 1
    %s505 = scalar_lea.sflag [#allocation7], 1
    %506 = vsyncpa %s505, 1
    %507 = vsyncpa [#allocation10], 1
    %s508 = scalar_lea.sflag [#allocation10], 1
    %509 = vsyncpa %s508, 1
    %510 = vsyncpa [#allocation8], 1
    %s511 = scalar_lea.sflag [#allocation8], 1
    %512 = vsyncpa %s511, 1

</llo_original>
